<compile_context>
chip_gen: v7x
topology: tpu7x:2x2x1
jax: 0.10.0
libtpu: 0.0.40
codegen_flags: <defaults>
</compile_context>

<pallas_src>
import jax
import jax.numpy as jnp
from jax.experimental import pallas as pl
from jax.experimental.pallas import tpu as pltpu


def _round_up(x, m):
    return (x + m - 1) // m * m


def mlp_kernel(x_ref,
               w1_ref, b1_ref,
               w2_ref, b2_ref,
               w3_ref, b3_ref,
               w4_ref, b4_ref,
               o_ref):
    # bf16 operands into the MXU, f32 accumulation; bias-add / ReLU in f32.
    x = x_ref[...]  # already bf16 (cast once in the wrapper)

    h1 = jnp.dot(x, w1_ref[...], preferred_element_type=jnp.float32) + b1_ref[...]
    h1 = jnp.maximum(h1, 0.0)

    h2 = jnp.dot(h1.astype(jnp.bfloat16), w2_ref[...],
                 preferred_element_type=jnp.float32) + b2_ref[...]
    h2 = jnp.maximum(h2, 0.0)

    h3 = jnp.dot(h2.astype(jnp.bfloat16), w3_ref[...],
                 preferred_element_type=jnp.float32) + b3_ref[...]
    h3 = jnp.maximum(h3, 0.0)

    out = jnp.dot(h3.astype(jnp.bfloat16), w4_ref[...],
                  preferred_element_type=jnp.float32) + b4_ref[...]
    o_ref[...] = out.astype(o_ref.dtype)


def _choose_batch_tile(batch, max_tb):
    """Balanced, sublane-aligned batch tiling with >=2 steps when splittable."""
    batch8 = _round_up(batch, 8)
    max_tb = max(8, _round_up(max_tb, 8))
    # At least 2 grid steps when possible so the "parallel" batch axis actually
    # shards across v7x's two TensorCores; tiles balanced so the final step is
    # not mostly padding rows.
    min_steps = 2 if batch8 >= 16 else 1
    n_steps = max(min_steps, pl.cdiv(batch8, max_tb))
    tb = _round_up(pl.cdiv(batch8, n_steps), 8)
    n_steps = pl.cdiv(batch8, tb)
    return tb, tb * n_steps, n_steps


def more_layer_forward(state, params, n_action, *, max_batch_tile=2048):
    """Fused 4-layer MLP forward on TPU via Pallas.

    state:  (batch, input_dim) float32 (cast to bf16 before the kernel)
    params: dict with w1..w4 as bf16 (in, out) — w4/b4 lane-padded to 128 —
            and b1..b4 as f32 (1, out)
    n_action: true (unpadded) number of actions
    returns (batch, n_action) float32
    """
    batch, input_dim = state.shape
    fc1 = params["w1"].shape[1]
    fc2 = params["w2"].shape[1]
    fc3 = params["w3"].shape[1]
    na_p = params["w4"].shape[1]          # lane-padded action width (>= n_action)

    tb, batch_p, n_steps = _choose_batch_tile(batch, max_batch_tile)

    # bf16 streamed input: half the HBM/DMA bytes, no in-kernel cast.
    state = state.astype(jnp.bfloat16)
    if batch_p != batch:
        state = jnp.pad(state, ((0, batch_p - batch), (0, 0)))

    grid = (n_steps,)

    def resident(shape):
        # Same block every grid step -> VMEM-resident; single pipeline buffer.
        return pl.BlockSpec(shape, lambda i: (0, 0), pipeline_mode=pl.Buffered(1))

    in_specs = [
        pl.BlockSpec((tb, input_dim), lambda i: (i, 0)),   # x: tiled over batch
        resident((input_dim, fc1)), resident((1, fc1)),
        resident((fc1, fc2)),       resident((1, fc2)),
        resident((fc2, fc3)),       resident((1, fc3)),
        resident((fc3, na_p)),      resident((1, na_p)),
    ]
    out_spec = pl.BlockSpec((tb, na_p), lambda i: (i, 0))

    flops = 2 * batch_p * (input_dim * fc1 + fc1 * fc2 + fc2 * fc3 + fc3 * na_p)
    bytes_accessed = int(
        state.size * state.dtype.itemsize
        + sum(int(v.size) * v.dtype.itemsize for v in params.values())
        + batch_p * na_p * 4)

    out_p = pl.pallas_call(
        mlp_kernel,
        out_shape=jax.ShapeDtypeStruct((batch_p, na_p), jnp.float32),
        grid=grid,
        in_specs=in_specs,
        out_specs=out_spec,
        compiler_params=pltpu.CompilerParams(
            dimension_semantics=("parallel",)),
        cost_estimate=pl.CostEstimate(
            flops=flops, transcendentals=0, bytes_accessed=bytes_accessed),
    )(state,
      params["w1"], params["b1"],
      params["w2"], params["b2"],
      params["w3"], params["b3"],
      params["w4"], params["b4"])

    return out_p[:batch, :n_action]


def init_params_f32(key, input_dim, fc1_dim, fc2_dim, fc3_dim, n_action):
    """f32 master params mimicking PyTorch nn.Linear default init:
    U(-1/sqrt(fan_in), 1/sqrt(fan_in)). Weights stored as (in, out)."""
    dims = [(input_dim, fc1_dim), (fc1_dim, fc2_dim),
            (fc2_dim, fc3_dim), (fc3_dim, n_action)]
    params = {}
    for i, (fan_in, fan_out) in enumerate(dims, start=1):
        key, kw, kb = jax.random.split(key, 3)
        bound = 1.0 / jnp.sqrt(jnp.float32(fan_in))
        params[f"w{i}"] = jax.random.uniform(
            kw, (fan_in, fan_out), jnp.float32, minval=-bound, maxval=bound)
        params[f"b{i}"] = jax.random.uniform(
            kb, (1, fan_out), jnp.float32, minval=-bound, maxval=bound)
    return params


def to_kernel_params(params_f32):
    """Weights bf16 (MXU-native, half the bytes); biases f32.
    w4/b4 zero-padded on the output axis to a multiple of 128 lanes so the
    kernel's output block is lane-dense (unmasked stores, dense writeback)."""
    out = {}
    for k, v in params_f32.items():
        out[k] = v.astype(jnp.bfloat16) if k.startswith("w") else v
    n_action = params_f32["w4"].shape[1]
    na_p = _round_up(n_action, 128)
    if na_p != n_action:
        pad = na_p - n_action
        out["w4"] = jnp.pad(out["w4"], ((0, 0), (0, pad)))
        out["b4"] = jnp.pad(out["b4"], ((0, 0), (0, pad)))
    return out


def reference_forward_f32(state, p):
    h = jnp.maximum(state @ p["w1"] + p["b1"], 0.0)
    h = jnp.maximum(h @ p["w2"] + p["b2"], 0.0)
    h = jnp.maximum(h @ p["w3"] + p["b3"], 0.0)
    return h @ p["w4"] + p["b4"]


def reference_forward_bf16(state, p):
    """Reference matching the kernel's numerics (bf16 operands, f32 accumulate)."""
    def lin(x, w, b):
        return jnp.dot(x.astype(jnp.bfloat16), w.astype(jnp.bfloat16),
                       preferred_element_type=jnp.float32) + b
    h = jnp.maximum(lin(state, p["w1"], p["b1"]), 0.0)
    h = jnp.maximum(lin(h, p["w2"], p["b2"]), 0.0)
    h = jnp.maximum(lin(h, p["w3"], p["b3"]), 0.0)
    return lin(h, p["w4"], p["b4"])


if __name__ == "__main__":
    # Small shapes consistent with the module's forward.
    input_dim, fc1_dim, fc2_dim, fc3_dim, n_action = 32, 64, 64, 32, 8
    # fc4_dim / lr / loss are unused by forward().

    key = jax.random.PRNGKey(0)
    key, kx = jax.random.split(key)

    params_f32 = init_params_f32(key, input_dim, fc1_dim, fc2_dim, fc3_dim, n_action)
    params = to_kernel_params(params_f32)

    # --- test 1: tiny batch (single 8-row sublane tile) ---
    batch = 4
    state = jax.random.normal(kx, (batch, input_dim), jnp.float32)
    actions = jax.block_until_ready(more_layer_forward(state, params, n_action))
    assert actions.shape == (batch, n_action)
    ref_bf16 = reference_forward_bf16(state, params_f32)
    ref_f32 = reference_forward_f32(state, params_f32)
    assert jnp.allclose(actions, ref_bf16, atol=1e-3, rtol=1e-3), \
        "mismatch vs bf16-matched reference"
    assert jnp.allclose(actions, ref_f32, atol=5e-2, rtol=5e-2), \
        "mismatch vs f32 reference"

    # --- test 2: multi-step balanced grid + batch padding (tb=16, 3 grid steps) ---
    key, kx2 = jax.random.split(key)
    batch2 = 40
    state2 = jax.random.normal(kx2, (batch2, input_dim), jnp.float32)
    actions2 = jax.block_until_ready(
        more_layer_forward(state2, params, n_action, max_batch_tile=16))
    assert actions2.shape == (batch2, n_action)
    assert jnp.allclose(actions2, reference_forward_bf16(state2, params_f32),
                        atol=1e-3, rtol=1e-3), \
        "mismatch vs bf16-matched reference (tiled)"

    # --- test 3: >=2 balanced steps at the default (large) tile cap ---
    key, kx3 = jax.random.split(key)
    batch3 = 300
    state3 = jax.random.normal(kx3, (batch3, input_dim), jnp.float32)
    actions3 = jax.block_until_ready(more_layer_forward(state3, params, n_action))
    assert actions3.shape == (batch3, n_action)
    assert jnp.allclose(actions3, reference_forward_bf16(state3, params_f32),
                        atol=1e-3, rtol=1e-3), \
        "mismatch vs bf16-matched reference (large batch)"

    print("KERNEL_OK")
</pallas_src>

<mosaic_0001>
module attributes {stable_mosaic.version = 11 : i64} {
  func.func @mlp_kernel(%arg0: i32, %arg1: memref<8x32xbf16, #tpu.memory_space<vmem>>, %arg2: memref<32x64xbf16, #tpu.memory_space<vmem>>, %arg3: memref<1x64xf32, #tpu.memory_space<vmem>>, %arg4: memref<64x64xbf16, #tpu.memory_space<vmem>>, %arg5: memref<1x64xf32, #tpu.memory_space<vmem>>, %arg6: memref<64x32xbf16, #tpu.memory_space<vmem>>, %arg7: memref<1x32xf32, #tpu.memory_space<vmem>>, %arg8: memref<32x128xbf16, #tpu.memory_space<vmem>>, %arg9: memref<1x128xf32, #tpu.memory_space<vmem>>, %arg10: memref<8x128xf32, #tpu.memory_space<vmem>>) attributes {dimension_semantics = [#tpu.dimension_semantics<parallel>], iteration_bounds = array<i64: 1>, scalar_prefetch = 0 : i64, scratch_operands = 0 : i64, tpu.core_type = #tpu.core_type<tc>, window_params = [{transform_indices = @transform_0, window_bounds = array<i64: 8, 32>}, {pipeline_mode = #tpu.pipeline_mode<synchronous>, transform_indices = @transform_1, window_bounds = array<i64: 32, 64>}, {pipeline_mode = #tpu.pipeline_mode<synchronous>, transform_indices = @transform_2, window_bounds = array<i64: 1, 64>}, {pipeline_mode = #tpu.pipeline_mode<synchronous>, transform_indices = @transform_3, window_bounds = array<i64: 64, 64>}, {pipeline_mode = #tpu.pipeline_mode<synchronous>, transform_indices = @transform_4, window_bounds = array<i64: 1, 64>}, {pipeline_mode = #tpu.pipeline_mode<synchronous>, transform_indices = @transform_5, window_bounds = array<i64: 64, 32>}, {pipeline_mode = #tpu.pipeline_mode<synchronous>, transform_indices = @transform_6, window_bounds = array<i64: 1, 32>}, {pipeline_mode = #tpu.pipeline_mode<synchronous>, transform_indices = @transform_7, window_bounds = array<i64: 32, 128>}, {pipeline_mode = #tpu.pipeline_mode<synchronous>, transform_indices = @transform_8, window_bounds = array<i64: 1, 128>}, {transform_indices = @transform_9, window_bounds = array<i64: 8, 128>}]} {
    %c0 = arith.constant 0 : index
    %c0_0 = arith.constant 0 : index
    %0 = vector.load %arg1[%c0, %c0_0] : memref<8x32xbf16, #tpu.memory_space<vmem>>, vector<8x32xbf16>
    %c0_1 = arith.constant 0 : index
    %c0_2 = arith.constant 0 : index
    %1 = vector.load %arg2[%c0_1, %c0_2] : memref<32x64xbf16, #tpu.memory_space<vmem>>, vector<32x64xbf16>
    %cst = arith.constant dense<0.000000e+00> : vector<8x64xf32>
    %2 = tpu.matmul %0, %1, %cst {dimension_numbers = #tpu.dot_dimension_numbers<[1], [0], [0], [1], [0, 0, 1, 1], [], []>} : vector<8x32xbf16>, vector<32x64xbf16>, vector<8x64xf32> -> vector<8x64xf32>
    %c0_3 = arith.constant 0 : index
    %c0_4 = arith.constant 0 : index
    %3 = vector.load %arg3[%c0_3, %c0_4] : memref<1x64xf32, #tpu.memory_space<vmem>>, vector<1x64xf32>
    %4 = vector.broadcast %3 : vector<1x64xf32> to vector<8x64xf32>
    %5 = arith.addf %2, %4 : vector<8x64xf32>
    %cst_5 = arith.constant 0.000000e+00 : f32
    %6 = vector.broadcast %cst_5 : f32 to vector<8x64xf32>
    %7 = arith.maximumf %5, %6 : vector<8x64xf32>
    %8 = arith.truncf %7 : vector<8x64xf32> to vector<8x64xbf16>
    %c0_6 = arith.constant 0 : index
    %c0_7 = arith.constant 0 : index
    %9 = vector.load %arg4[%c0_6, %c0_7] : memref<64x64xbf16, #tpu.memory_space<vmem>>, vector<64x64xbf16>
    %cst_8 = arith.constant dense<0.000000e+00> : vector<8x64xf32>
    %10 = tpu.matmul %8, %9, %cst_8 {dimension_numbers = #tpu.dot_dimension_numbers<[1], [0], [0], [1], [0, 0, 1, 1], [], []>} : vector<8x64xbf16>, vector<64x64xbf16>, vector<8x64xf32> -> vector<8x64xf32>
    %c0_9 = arith.constant 0 : index
    %c0_10 = arith.constant 0 : index
    %11 = vector.load %arg5[%c0_9, %c0_10] : memref<1x64xf32, #tpu.memory_space<vmem>>, vector<1x64xf32>
    %12 = vector.broadcast %11 : vector<1x64xf32> to vector<8x64xf32>
    %13 = arith.addf %10, %12 : vector<8x64xf32>
    %cst_11 = arith.constant 0.000000e+00 : f32
    %14 = vector.broadcast %cst_11 : f32 to vector<8x64xf32>
    %15 = arith.maximumf %13, %14 : vector<8x64xf32>
    %16 = arith.truncf %15 : vector<8x64xf32> to vector<8x64xbf16>
    %c0_12 = arith.constant 0 : index
    %c0_13 = arith.constant 0 : index
    %17 = vector.load %arg6[%c0_12, %c0_13] : memref<64x32xbf16, #tpu.memory_space<vmem>>, vector<64x32xbf16>
    %cst_14 = arith.constant dense<0.000000e+00> : vector<8x32xf32>
    %18 = tpu.matmul %16, %17, %cst_14 {dimension_numbers = #tpu.dot_dimension_numbers<[1], [0], [0], [1], [0, 0, 1, 1], [], []>} : vector<8x64xbf16>, vector<64x32xbf16>, vector<8x32xf32> -> vector<8x32xf32>
    %c0_15 = arith.constant 0 : index
    %c0_16 = arith.constant 0 : index
    %19 = vector.load %arg7[%c0_15, %c0_16] : memref<1x32xf32, #tpu.memory_space<vmem>>, vector<1x32xf32>
    %20 = vector.broadcast %19 : vector<1x32xf32> to vector<8x32xf32>
    %21 = arith.addf %18, %20 : vector<8x32xf32>
    %cst_17 = arith.constant 0.000000e+00 : f32
    %22 = vector.broadcast %cst_17 : f32 to vector<8x32xf32>
    %23 = arith.maximumf %21, %22 : vector<8x32xf32>
    %24 = arith.truncf %23 : vector<8x32xf32> to vector<8x32xbf16>
    %c0_18 = arith.constant 0 : index
    %c0_19 = arith.constant 0 : index
    %25 = vector.load %arg8[%c0_18, %c0_19] : memref<32x128xbf16, #tpu.memory_space<vmem>>, vector<32x128xbf16>
    %cst_20 = arith.constant dense<0.000000e+00> : vector<8x128xf32>
    %26 = tpu.matmul %24, %25, %cst_20 {dimension_numbers = #tpu.dot_dimension_numbers<[1], [0], [0], [1], [0, 0, 1, 1], [], []>} : vector<8x32xbf16>, vector<32x128xbf16>, vector<8x128xf32> -> vector<8x128xf32>
    %c0_21 = arith.constant 0 : index
    %c0_22 = arith.constant 0 : index
    %27 = vector.load %arg9[%c0_21, %c0_22] : memref<1x128xf32, #tpu.memory_space<vmem>>, vector<1x128xf32>
    %28 = vector.broadcast %27 : vector<1x128xf32> to vector<8x128xf32>
    %29 = arith.addf %26, %28 : vector<8x128xf32>
    %c0_23 = arith.constant 0 : index
    %c0_24 = arith.constant 0 : index
    %30 = vector.load %arg10[%c0_23, %c0_24] : memref<8x128xf32, #tpu.memory_space<vmem>>, vector<8x128xf32>
    tpu.vector_store %arg10[%c0_23, %c0_24], %29 {strides = array<i32>} : memref<8x128xf32, #tpu.memory_space<vmem>>, vector<8x128xf32>,
    return
  }
  func.func @transform_0(%arg0: i32) -> (i32, i32) {
    %c0_i32 = arith.constant 0 : i32
    %c0_i32_0 = arith.constant 0 : i32
    return %arg0, %c0_i32 : i32, i32
  }
  func.func @transform_1(%arg0: i32) -> (i32, i32) {
    %c0_i32 = arith.constant 0 : i32
    %c0_i32_0 = arith.constant 0 : i32
    %c0_i32_1 = arith.constant 0 : i32
    return %c0_i32, %c0_i32_0 : i32, i32
  }
  func.func @transform_2(%arg0: i32) -> (i32, i32) {
    %c0_i32 = arith.constant 0 : i32
    %c0_i32_0 = arith.constant 0 : i32
    %c0_i32_1 = arith.constant 0 : i32
    return %c0_i32, %c0_i32_0 : i32, i32
  }
  func.func @transform_3(%arg0: i32) -> (i32, i32) {
    %c0_i32 = arith.constant 0 : i32
    %c0_i32_0 = arith.constant 0 : i32
    %c0_i32_1 = arith.constant 0 : i32
    return %c0_i32, %c0_i32_0 : i32, i32
  }
  func.func @transform_4(%arg0: i32) -> (i32, i32) {
    %c0_i32 = arith.constant 0 : i32
    %c0_i32_0 = arith.constant 0 : i32
    %c0_i32_1 = arith.constant 0 : i32
    return %c0_i32, %c0_i32_0 : i32, i32
  }
  func.func @transform_5(%arg0: i32) -> (i32, i32) {
    %c0_i32 = arith.constant 0 : i32
    %c0_i32_0 = arith.constant 0 : i32
    %c0_i32_1 = arith.constant 0 : i32
    return %c0_i32, %c0_i32_0 : i32, i32
  }
  func.func @transform_6(%arg0: i32) -> (i32, i32) {
    %c0_i32 = arith.constant 0 : i32
    %c0_i32_0 = arith.constant 0 : i32
    %c0_i32_1 = arith.constant 0 : i32
    return %c0_i32, %c0_i32_0 : i32, i32
  }
  func.func @transform_7(%arg0: i32) -> (i32, i32) {
    %c0_i32 = arith.constant 0 : i32
    %c0_i32_0 = arith.constant 0 : i32
    %c0_i32_1 = arith.constant 0 : i32
    return %c0_i32, %c0_i32_0 : i32, i32
  }
  func.func @transform_8(%arg0: i32) -> (i32, i32) {
    %c0_i32 = arith.constant 0 : i32
    %c0_i32_0 = arith.constant 0 : i32
    %c0_i32_1 = arith.constant 0 : i32
    return %c0_i32, %c0_i32_0 : i32, i32
  }
  func.func @transform_9(%arg0: i32) -> (i32, i32) {
    %c0_i32 = arith.constant 0 : i32
    %c0_i32_0 = arith.constant 0 : i32
    return %arg0, %c0_i32 : i32, i32
  }
}

</mosaic_0001>

<llo_original>
// kernel: tpu_custom_call.1
$region0: #{tpu_custom_call.1}
  #allocation0 [shape = 'u32[]', space=smem, size = 0x4, offset = 0x4, fixed_abs, tag = 'smem constant byte address 0x4 - core index']
  #allocation1 [shape = 'u32[144,128]{1,0:T(1,128)}', space=vmem, size = 0x12000, scoped, tag = 'internal scratch']
  %s0 = inlined_call_operand.hbm [shape: bf16[8,32], index: 0, kind: input, shape index: {}]
  %s1 = inlined_call_operand.vmem [shape: bf16[32,64], index: 1, kind: input, shape index: {}]
  %s2 = inlined_call_operand.vmem [shape: f32[1,64], index: 2, kind: input, shape index: {}]
  %s3 = inlined_call_operand.vmem [shape: bf16[64,64], index: 3, kind: input, shape index: {}]
  %s4 = inlined_call_operand.vmem [shape: f32[1,64], index: 4, kind: input, shape index: {}]
  %s5 = inlined_call_operand.vmem [shape: bf16[64,32], index: 5, kind: input, shape index: {}]
  %s6 = inlined_call_operand.vmem [shape: f32[1,32], index: 6, kind: input, shape index: {}]
  %s7 = inlined_call_operand.hbm [shape: bf16[32,128], index: 7, kind: input, shape index: {}]
  %s8 = inlined_call_operand.vmem [shape: f32[1,128], index: 8, kind: input, shape index: {}]
  %s9 = inlined_call_operand.hbm [shape: f32[8,128], index: 9, kind: output, shape index: {}]
  %s10 = sld [smem:[#allocation0]]
  $region54: #{tpu_custom_call.1} parent=0
    _
  %s12 = ssub.s32 1, %s10
  %s13 = scalar_select 0, %s12, %s10
  $region1: #{tpu_custom_call.1} parent=0
    #allocation2 [shape = 'u8[2048]{0}', space=vmem, size = 0x800, scoped, tag = 'input window, operand 0, single buffered']
    #allocation3 [shape = 's32[1]{0}', space=sflag, size = 0x4, scoped, tag = 'scoped memory for tpu_custom_call.1']
    #allocation4 [shape = 's32[1]{0}', space=sflag, size = 0x4, scoped, tag = 'scoped memory for tpu_custom_call.1']
    #allocation5 [shape = 'u8[8192]{0}', space=vmem, size = 0x2000, scoped, tag = 'input window, operand 7, single buffered']
    #allocation6 [shape = 's32[1]{0}', space=sflag, size = 0x4, scoped, tag = 'scoped memory for tpu_custom_call.1']
    #allocation7 [shape = 'u8[4096]{0}', space=vmem, size = 0x1000, scoped, tag = 'output window, operand 0, single buffered']
    %14 = vsyncpa [#allocation3], 0
    %15 = vsyncpa [#allocation6], 0
    %16 = vsyncpa [#allocation4], 0
    // Predicated region
    $region2: #{tpu_custom_call.1} parent=1 // pred_check
      _
    $region3: #{tpu_custom_call.1} parent=1 // pred_check_branch
      %18 = sbr.rel (0) target = $region5
    $region4: #{tpu_custom_call.1} parent=1 // pred_region
      %s20 = ssub.s32 64, 64
      %21 = vsyncadd [#allocation3], %s20
      %s23 = sshll.u32 [#allocation2], 4
      %s24 = int_to_ptr.vmem [resolvable:$true] %s23
      %26 = dma.hbm_to_vmem [thread:$0]  %s0, 64, %s24, [#allocation3]
    $region5: #{tpu_custom_call.1} parent=1 // pred_fallthru
      _
    // Predicated region
    $region6: #{tpu_custom_call.1} parent=1 // pred_check
      _
    $region7: #{tpu_custom_call.1} parent=1 // pred_check_branch
      %28 = sbr.rel (0) target = $region9
    $region8: #{tpu_custom_call.1} parent=1 // pred_region
      _
    $region9: #{tpu_custom_call.1} parent=1 // pred_fallthru
      _
    // Predicated region
    $region10: #{tpu_custom_call.1} parent=1 // pred_check
      _
    $region11: #{tpu_custom_call.1} parent=1 // pred_check_branch
      %30 = sbr.rel (0) target = $region13
    $region12: #{tpu_custom_call.1} parent=1 // pred_region
      _
    $region13: #{tpu_custom_call.1} parent=1 // pred_fallthru
      _
    // Predicated region
    $region14: #{tpu_custom_call.1} parent=1 // pred_check
      _
    $region15: #{tpu_custom_call.1} parent=1 // pred_check_branch
      %32 = sbr.rel (0) target = $region17
    $region16: #{tpu_custom_call.1} parent=1 // pred_region
      _
    $region17: #{tpu_custom_call.1} parent=1 // pred_fallthru
      _
    // Predicated region
    $region18: #{tpu_custom_call.1} parent=1 // pred_check
      _
    $region19: #{tpu_custom_call.1} parent=1 // pred_check_branch
      %34 = sbr.rel (0) target = $region21
    $region20: #{tpu_custom_call.1} parent=1 // pred_region
      _
    $region21: #{tpu_custom_call.1} parent=1 // pred_fallthru
      _
    // Predicated region
    $region22: #{tpu_custom_call.1} parent=1 // pred_check
      _
    $region23: #{tpu_custom_call.1} parent=1 // pred_check_branch
      %36 = sbr.rel (0) target = $region25
    $region24: #{tpu_custom_call.1} parent=1 // pred_region
      _
    $region25: #{tpu_custom_call.1} parent=1 // pred_fallthru
      _
    // Predicated region
    $region26: #{tpu_custom_call.1} parent=1 // pred_check
      _
    $region27: #{tpu_custom_call.1} parent=1 // pred_check_branch
      %38 = sbr.rel (0) target = $region29
    $region28: #{tpu_custom_call.1} parent=1 // pred_region
      _
    $region29: #{tpu_custom_call.1} parent=1 // pred_fallthru
      _
    // Predicated region
    $region30: #{tpu_custom_call.1} parent=1 // pred_check
      _
    $region31: #{tpu_custom_call.1} parent=1 // pred_check_branch
      %40 = sbr.rel (0) target = $region33
    $region32: #{tpu_custom_call.1} parent=1 // pred_region
      %s42 = ssub.s32 256, 256
      %43 = vsyncadd [#allocation6], %s42
      %s44 = sshll.u32 [#allocation5], 4
      %s45 = int_to_ptr.vmem [resolvable:$true] %s44
      %50 = dma.hbm_to_vmem [thread:$0]  %s7, 256, %s45, [#allocation6], 64, 64, 4
    $region33: #{tpu_custom_call.1} parent=1 // pred_fallthru
      _
    // Predicated region
    $region34: #{tpu_custom_call.1} parent=1 // pred_check
      _
    $region35: #{tpu_custom_call.1} parent=1 // pred_check_branch
      %52 = sbr.rel (0) target = $region37
    $region36: #{tpu_custom_call.1} parent=1 // pred_region
      _
    $region37: #{tpu_custom_call.1} parent=1 // pred_fallthru
      _
    // Predicated region
    $region38: #{tpu_custom_call.1} parent=1 // pred_check
      _
    $region39: #{tpu_custom_call.1} parent=1 // pred_check_branch
      %54 = sbr.rel (0) target = $region41
    $region40: #{tpu_custom_call.1} parent=1 // pred_region
      %55 = dma.done [#allocation3], 64
    $region41: #{tpu_custom_call.1} parent=1 // pred_fallthru
      _
    // Predicated region
    $region42: #{tpu_custom_call.1} parent=1 // pred_check
      _
    $region43: #{tpu_custom_call.1} parent=1 // pred_check_branch
      %57 = sbr.rel (0) target = $region45
    $region44: #{tpu_custom_call.1} parent=1 // pred_region
      %58 = dma.done [#allocation6], 256
    $region45: #{tpu_custom_call.1} parent=1 // pred_fallthru
      _
    %v60 = vld [vmem:[#allocation2] sm:$0xf]
    %v61 = vld [vmem:[%s1] sm:$0xf]
    %v62 = vld [vmem:[%s1 + $0x4] sm:$0xf]
    %v63 = vld [vmem:[%s1 + $0x8] sm:$0xf]
    %v64 = vld [vmem:[%s1 + $0xc] sm:$0xf]
    %v65 = vld [vmem:[%s2] sm:$0x1]
    %v67 = vlaneseq
    %v68 = vshrl.u32 %v67, 7
    %v69 = vsub.s32 0, %v68
    %v70 = vrot.slane %v65, %v69
    %v76 = vunpack.c.l.b16 %v61
    %v77 = vunpack.c.l.b16 %v62
    %v78 = vunpack.c.l.b16 %v63
    %v79 = vunpack.c.l.b16 %v64
    %v80 = vpack.c.b16 %v77, %v76
    %v81 = vpack.c.b16 %v79, %v78
    %vm84 = vcmask 261120
    %v86 = vsel %vm84, %v60, 0
    %88 = vmatprep.subr.bf16.mxu0 0
    %89 = vmatpush1.bf16.msra.mxu0 %v80
    %90 = vmatprep.subr.bf16.mxu0 0
    %91 = vmatpush1.bf16.msra.mxu0 %v81
    %92 = vmatprep.subr.bf16.mxu0 0
    %93 = vmatpush1.bf16.msra.mxu0 0
    %94 = vmatprep.subr.bf16.mxu0 0
    %95 = vmatpush1.bf16.msra.mxu0 0
    %96 = vmatprep.subr.bf16.mxu0 0
    %97 = vmatpush1.bf16.msra.mxu0 0
    %98 = vmatprep.subr.bf16.mxu0 0
    %99 = vmatpush1.bf16.msra.mxu0 0
    %100 = vmatprep.subr.bf16.mxu0 0
    %101 = vmatpush1.bf16.msra.mxu0 0
    %102 = vmatprep.subr.bf16.mxu0 0
    %103 = vmatpush1.bf16.msra.mxu0 0
    %104 = vmatprep.subr.bf16.mxu0 0
    %105 = vmatpush1.bf16.msra.mxu0 0
    %106 = vmatprep.subr.bf16.mxu0 0
    %107 = vmatpush1.bf16.msra.mxu0 0
    %108 = vmatprep.subr.bf16.mxu0 0
    %109 = vmatpush1.bf16.msra.mxu0 0
    %110 = vmatprep.subr.bf16.mxu0 0
    %111 = vmatpush1.bf16.msra.mxu0 0
    %112 = vmatprep.subr.bf16.mxu0 0
    %113 = vmatpush1.bf16.msra.mxu0 0
    %114 = vmatprep.subr.bf16.mxu0 0
    %115 = vmatpush1.bf16.msra.mxu0 0
    %116 = vmatprep.subr.bf16.mxu0 0
    %117 = vmatpush1.bf16.msra.mxu0 0
    %118 = vmatprep.subr.bf16.mxu0 0
    %119 = vmatpush1.bf16.msra.mxu0 0
    %120 = vmatprep.mubr.bf16.mxu0 0
    %121 = vmatmul.mubr.bf16.gmra.mrb[0].mxu0 %v86
    %v122 = vpop.f32.mrb[0].mxu0
    %v123 = vadd.f32 %v70, %v122
    %v124 = vpop.f32.mrb[0].mxu0
    %v125 = vpop.f32.mrb[0].mxu0
    %v126 = vpop.f32.mrb[0].mxu0
    %127 = vdwg.mxu0
    %v128 = vmax.f32 %v123, 0.0
    %v129 = vpack.c.bf16 %v128, %v128
    %v130 = vld [vmem:[%s3] sm:$0xf]
    %v131 = vld [vmem:[%s3 + $0x4] sm:$0xf]
    %v132 = vld [vmem:[%s3 + $0x8] sm:$0xf]
    %v133 = vld [vmem:[%s3 + $0xc] sm:$0xf]
    %v134 = vld [vmem:[%s3 + $0x10] sm:$0xf]
    %v135 = vld [vmem:[%s3 + $0x14] sm:$0xf]
    %v136 = vld [vmem:[%s3 + $0x18] sm:$0xf]
    %v137 = vld [vmem:[%s3 + $0x1c] sm:$0xf]
    %v138 = vld [vmem:[%s4] sm:$0x1]
    %v140 = vlaneseq
    %v141 = vshrl.u32 %v140, 7
    %v142 = vsub.s32 0, %v141
    %v143 = vrot.slane %v138, %v142
    %v153 = vunpack.c.l.b16 %v130
    %v154 = vunpack.c.l.b16 %v131
    %v155 = vunpack.c.l.b16 %v132
    %v156 = vunpack.c.l.b16 %v133
    %v157 = vunpack.c.l.b16 %v134
    %v158 = vunpack.c.l.b16 %v135
    %v159 = vunpack.c.l.b16 %v136
    %v160 = vunpack.c.l.b16 %v137
    %v161 = vpack.c.b16 %v154, %v153
    %v162 = vpack.c.b16 %v156, %v155
    %v163 = vpack.c.b16 %v158, %v157
    %v164 = vpack.c.b16 %v160, %v159
    %vm169 = vcmask 523264
    %v171 = vsel %vm169, %v129, 0
    %173 = vmatprep.subr.bf16.mxu0 0
    %174 = vmatpush1.bf16.msra.mxu0 %v161
    %175 = vmatprep.subr.bf16.mxu0 0
    %176 = vmatpush1.bf16.msra.mxu0 %v162
    %177 = vmatprep.subr.bf16.mxu0 0
    %178 = vmatpush1.bf16.msra.mxu0 %v163
    %179 = vmatprep.subr.bf16.mxu0 0
    %180 = vmatpush1.bf16.msra.mxu0 %v164
    %181 = vmatprep.subr.bf16.mxu0 0
    %182 = vmatpush1.bf16.msra.mxu0 0
    %183 = vmatprep.subr.bf16.mxu0 0
    %184 = vmatpush1.bf16.msra.mxu0 0
    %185 = vmatprep.subr.bf16.mxu0 0
    %186 = vmatpush1.bf16.msra.mxu0 0
    %187 = vmatprep.subr.bf16.mxu0 0
    %188 = vmatpush1.bf16.msra.mxu0 0
    %189 = vmatprep.subr.bf16.mxu0 0
    %190 = vmatpush1.bf16.msra.mxu0 0
    %191 = vmatprep.subr.bf16.mxu0 0
    %192 = vmatpush1.bf16.msra.mxu0 0
    %193 = vmatprep.subr.bf16.mxu0 0
    %194 = vmatpush1.bf16.msra.mxu0 0
    %195 = vmatprep.subr.bf16.mxu0 0
    %196 = vmatpush1.bf16.msra.mxu0 0
    %197 = vmatprep.subr.bf16.mxu0 0
    %198 = vmatpush1.bf16.msra.mxu0 0
    %199 = vmatprep.subr.bf16.mxu0 0
    %200 = vmatpush1.bf16.msra.mxu0 0
    %201 = vmatprep.subr.bf16.mxu0 0
    %202 = vmatpush1.bf16.msra.mxu0 0
    %203 = vmatprep.subr.bf16.mxu0 0
    %204 = vmatpush1.bf16.msra.mxu0 0
    %205 = vmatprep.mubr.bf16.mxu0 0
    %206 = vmatmul.mubr.bf16.gmra.mrb[0].mxu0 %v171
    %v207 = vpop.f32.mrb[0].mxu0
    %v208 = vadd.f32 %v143, %v207
    %v209 = vpop.f32.mrb[0].mxu0
    %v210 = vpop.f32.mrb[0].mxu0
    %v211 = vpop.f32.mrb[0].mxu0
    %212 = vdwg.mxu0
    %v213 = vmax.f32 %v208, 0.0
    %v214 = vpack.c.bf16 %v213, %v213
    %v215 = vld [vmem:[%s5] sm:$0xf]
    %v216 = vld [vmem:[%s5 + $0x4] sm:$0xf]
    %v217 = vld [vmem:[%s5 + $0x8] sm:$0xf]
    %v218 = vld [vmem:[%s5 + $0xc] sm:$0xf]
    %v219 = vld [vmem:[%s5 + $0x10] sm:$0xf]
    %v220 = vld [vmem:[%s5 + $0x14] sm:$0xf]
    %v221 = vld [vmem:[%s5 + $0x18] sm:$0xf]
    %v222 = vld [vmem:[%s5 + $0x1c] sm:$0xf]
    %v223 = vld [vmem:[%s6] sm:$0x1]
    %v225 = vlaneseq
    %v226 = vshrl.u32 %v225, 7
    %v227 = vsub.s32 0, %v226
    %v228 = vrot.slane %v223, %v227
    %v238 = vunpack.c.l.b16 %v215
    %v239 = vunpack.c.l.b16 %v216
    %v240 = vunpack.c.l.b16 %v217
    %v241 = vunpack.c.l.b16 %v218
    %v242 = vunpack.c.l.b16 %v219
    %v243 = vunpack.c.l.b16 %v220
    %v244 = vunpack.c.l.b16 %v221
    %v245 = vunpack.c.l.b16 %v222
    %v246 = vpack.c.b16 %v239, %v238
    %v247 = vpack.c.b16 %v241, %v240
    %v248 = vpack.c.b16 %v243, %v242
    %v249 = vpack.c.b16 %v245, %v244
    %v255 = vsel %vm169, %v214, 0
    %257 = vmatprep.subr.bf16.mxu0 0
    %258 = vmatpush1.bf16.msra.mxu0 %v246
    %259 = vmatprep.subr.bf16.mxu0 0
    %260 = vmatpush1.bf16.msra.mxu0 %v247
    %261 = vmatprep.subr.bf16.mxu0 0
    %262 = vmatpush1.bf16.msra.mxu0 %v248
    %263 = vmatprep.subr.bf16.mxu0 0
    %264 = vmatpush1.bf16.msra.mxu0 %v249
    %265 = vmatprep.subr.bf16.mxu0 0
    %266 = vmatpush1.bf16.msra.mxu0 0
    %267 = vmatprep.subr.bf16.mxu0 0
    %268 = vmatpush1.bf16.msra.mxu0 0
    %269 = vmatprep.subr.bf16.mxu0 0
    %270 = vmatpush1.bf16.msra.mxu0 0
    %271 = vmatprep.subr.bf16.mxu0 0
    %272 = vmatpush1.bf16.msra.mxu0 0
    %273 = vmatprep.subr.bf16.mxu0 0
    %274 = vmatpush1.bf16.msra.mxu0 0
    %275 = vmatprep.subr.bf16.mxu0 0
    %276 = vmatpush1.bf16.msra.mxu0 0
    %277 = vmatprep.subr.bf16.mxu0 0
    %278 = vmatpush1.bf16.msra.mxu0 0
    %279 = vmatprep.subr.bf16.mxu0 0
    %280 = vmatpush1.bf16.msra.mxu0 0
    %281 = vmatprep.subr.bf16.mxu0 0
    %282 = vmatpush1.bf16.msra.mxu0 0
    %283 = vmatprep.subr.bf16.mxu0 0
    %284 = vmatpush1.bf16.msra.mxu0 0
    %285 = vmatprep.subr.bf16.mxu0 0
    %286 = vmatpush1.bf16.msra.mxu0 0
    %287 = vmatprep.subr.bf16.mxu0 0
    %288 = vmatpush1.bf16.msra.mxu0 0
    %289 = vmatprep.mubr.bf16.mxu0 0
    %290 = vmatmul.mubr.bf16.gmra.mrb[0].mxu0 %v255
    %v291 = vpop.f32.mrb[0].mxu0
    %v292 = vadd.f32 %v228, %v291
    %v293 = vpop.f32.mrb[0].mxu0
    %v294 = vpop.f32.mrb[0].mxu0
    %v295 = vpop.f32.mrb[0].mxu0
    %296 = vdwg.mxu0
    %v297 = vmax.f32 %v292, 0.0
    %v298 = vpack.c.bf16 %v297, %v297
    %v299 = vld [vmem:[#allocation5] sm:$0xf]
    %v300 = vld [vmem:[#allocation5 + $0x4] sm:$0xf]
    %v301 = vld [vmem:[#allocation5 + $0x8] sm:$0xf]
    %v302 = vld [vmem:[#allocation5 + $0xc] sm:$0xf]
    %v303 = vld [vmem:[%s8] sm:$0x1]
    %v305 = vlaneseq
    %v306 = vshrl.u32 %v305, 7
    %v307 = vsub.s32 0, %v306
    %v308 = vrot.slane %v303, %v307
    %v314 = vunpack.c.l.b16 %v299
    %v315 = vunpack.c.l.b16 %v300
    %v316 = vunpack.c.l.b16 %v301
    %v317 = vunpack.c.l.b16 %v302
    %v318 = vpack.c.b16 %v315, %v314
    %v319 = vpack.c.b16 %v317, %v316
    %v323 = vsel %vm84, %v298, 0
    %325 = vmatprep.subr.bf16.mxu0 0
    %326 = vmatpush1.bf16.msra.mxu0 %v318
    %327 = vmatprep.subr.bf16.mxu0 0
    %328 = vmatpush1.bf16.msra.mxu0 %v319
    %329 = vmatprep.subr.bf16.mxu0 0
    %330 = vmatpush1.bf16.msra.mxu0 0
    %331 = vmatprep.subr.bf16.mxu0 0
    %332 = vmatpush1.bf16.msra.mxu0 0
    %333 = vmatprep.subr.bf16.mxu0 0
    %334 = vmatpush1.bf16.msra.mxu0 0
    %335 = vmatprep.subr.bf16.mxu0 0
    %336 = vmatpush1.bf16.msra.mxu0 0
    %337 = vmatprep.subr.bf16.mxu0 0
    %338 = vmatpush1.bf16.msra.mxu0 0
    %339 = vmatprep.subr.bf16.mxu0 0
    %340 = vmatpush1.bf16.msra.mxu0 0
    %341 = vmatprep.subr.bf16.mxu0 0
    %342 = vmatpush1.bf16.msra.mxu0 0
    %343 = vmatprep.subr.bf16.mxu0 0
    %344 = vmatpush1.bf16.msra.mxu0 0
    %345 = vmatprep.subr.bf16.mxu0 0
    %346 = vmatpush1.bf16.msra.mxu0 0
    %347 = vmatprep.subr.bf16.mxu0 0
    %348 = vmatpush1.bf16.msra.mxu0 0
    %349 = vmatprep.subr.bf16.mxu0 0
    %350 = vmatpush1.bf16.msra.mxu0 0
    %351 = vmatprep.subr.bf16.mxu0 0
    %352 = vmatpush1.bf16.msra.mxu0 0
    %353 = vmatprep.subr.bf16.mxu0 0
    %354 = vmatpush1.bf16.msra.mxu0 0
    %355 = vmatprep.subr.bf16.mxu0 0
    %356 = vmatpush1.bf16.msra.mxu0 0
    %357 = vmatprep.mubr.bf16.mxu0 0
    %358 = vmatmul.mubr.bf16.gmra.mrb[0].mxu0 %v323
    %v359 = vpop.f32.mrb[0].mxu0
    %v360 = vadd.f32 %v308, %v359
    %v361 = vpop.f32.mrb[0].mxu0
    %v362 = vpop.f32.mrb[0].mxu0
    %v363 = vpop.f32.mrb[0].mxu0
    %364 = vdwg.mxu0
    %365 = vst [vmem:[#allocation7] sm:$0xff] %v360
    // Predicated region
    $region46: #{tpu_custom_call.1} parent=1 // pred_check
      _
    $region47: #{tpu_custom_call.1} parent=1 // pred_check_branch
      %367 = sbr.rel (0) target = $region49
    $region48: #{tpu_custom_call.1} parent=1 // pred_region
      %s369 = ssub.s32 128, 128
      %370 = vsyncadd [#allocation4], %s369
      %s372 = sshll.u32 [#allocation7], 4
      %s373 = int_to_ptr.vmem [resolvable:$true] %s372
      %375 = dma.vmem_to_hbm [thread:$0]  %s373, 128, %s9, [#allocation4]
    $region49: #{tpu_custom_call.1} parent=1 // pred_fallthru
      _
    // Predicated region
    $region50: #{tpu_custom_call.1} parent=1 // pred_check
      _
    $region51: #{tpu_custom_call.1} parent=1 // pred_check_branch
      %377 = sbr.rel (0) target = $region53
    $region52: #{tpu_custom_call.1} parent=1 // pred_region
      %378 = dma.done [#allocation4], 128
    $region53: #{tpu_custom_call.1} parent=1 // pred_fallthru
      _
    %379 = vsyncpa [#allocation3], 1
    %380 = vsyncpa [#allocation6], 1
    %381 = vsyncpa [#allocation4], 1

</llo_original>
